<compile_context>
chip_gen: v5e
topology: v5e:2x2
jax: 0.10.0
libtpu: 0.0.40
codegen_flags: <defaults>
</compile_context>

<pallas_src>
import math

import jax
import jax.numpy as jnp
from jax.experimental import pallas as pl
from jax.experimental.pallas import tpu as pltpu

K_SCALE = 2.0
LBD_SCALE = 2.0
LOG_K_SCALE = math.log(K_SCALE)
LOG_LBD_SCALE = math.log(LBD_SCALE)
HALF_LOG_2PI = 0.5 * math.log(2.0 * math.pi)


def weibull_vi_kernel(param_ref, eps_ref, i_ref, d_ref, y_ref, out_ref):
    # param_ref: (4, 2), rows = [alpha, beta0, betai, betad], cols = [mu, logvar]
    pv = param_ref[...]
    mu_col = pv[:, 0:1]                          # (4, 1)
    lv_col = pv[:, 1:2]                          # (4, 1)
    sd_col = jnp.exp(0.5 * lv_col)               # one vector exp for all 4 std-devs

    eps = eps_ref[...]                           # (4, S): samples on the lane axis
    smp = eps * sd_col + mu_col                  # (4, S) reparameterized samples

    alpha = smp[0:1, :]                          # (1, S) lane-dense rows (free static views)
    beta_0 = smp[1:2, :]
    beta_i = smp[2:3, :]
    beta_d = smp[3:4, :]

    i_col = i_ref[...]                           # (N, 1)
    d_col = d_ref[...]
    y_col = y_ref[...]

    # log k = log(K_SCALE * sigmoid(alpha)) = log K_SCALE - log(1 + exp(-alpha))
    # (k itself is never needed -- only log k.)
    log_k = LOG_K_SCALE - jnp.log(1.0 + jnp.exp(-alpha))             # (1, S)

    # lbd = LBD_SCALE * sigmoid(unc_lbd); share one exp between lbd and log(lbd).
    # Rank-2 VPU update on purpose: (S,3)x(3,N) is far too small for the MXU.
    unc_lbd = -(beta_0 + beta_i * i_col + beta_d * d_col)            # (N, S): one vreg
    t = jnp.exp(-unc_lbd)
    one_plus_t = 1.0 + t
    # Exact reciprocal keeps tight agreement with the f32 reference;
    # pl.reciprocal(one_plus_t, approx=True) is a further (looser-tolerance) option.
    lbd = LBD_SCALE * pl.reciprocal(one_plus_t)                      # (N, S)
    log_lbd = LOG_LBD_SCALE - jnp.log(one_plus_t)                    # (N, S)

    # Weibull(scale=k, concentration=lbd).log_prob(y)
    #   = log(lbd) - log(k) + (lbd - 1) * log(y / k) - (y / k) ** lbd
    z = jnp.log(y_col) - log_k                                       # (N, S)
    lp = log_lbd - log_k + (lbd - 1.0) * z - jnp.exp(lbd * z)        # (N, S)

    inv_s = 1.0 / eps.shape[1]                   # static Python constant (no runtime divide)
    # mean over samples of (sum over data axis) == sum(lp) / n_sample
    lls_mean = jnp.sum(lp) * inv_s

    # penalty: sum_j Normal(mu_j, sd_j).log_prob(mu_j + sd_j * eps_j)
    #        = -0.5 * eps_j^2 - log(sd_j) - 0.5*log(2*pi)
    log_sd_sum = 0.5 * jnp.sum(lv_col)
    pen_mean = -0.5 * jnp.sum(eps * eps) * inv_s - log_sd_sum - 4.0 * HALF_LOG_2PI

    out_ref[0, 0] = -lls_mean + pen_mean


def model_forward(param, eps, i, d, y):
    """param: (8,) = [mu, logvar] x {alpha, beta0, betai, betad};
    eps: (4, n_sample) standard-normal noise (rows = alpha, beta0, betai, betad);
    i/d/y: (N,).  Returns the scalar loss."""
    N = i.shape[0]
    param2 = param.astype(jnp.float32).reshape(4, 2)
    i_col = i.reshape(N, 1).astype(jnp.float32)
    d_col = d.reshape(N, 1).astype(jnp.float32)
    y_col = y.reshape(N, 1).astype(jnp.float32)

    out = pl.pallas_call(
        weibull_vi_kernel,
        out_shape=jax.ShapeDtypeStruct((1, 1), jnp.float32),
        in_specs=[
            pl.BlockSpec(memory_space=pltpu.MemorySpace.VMEM),   # param (4, 2)
            pl.BlockSpec(memory_space=pltpu.MemorySpace.VMEM),   # eps   (4, S)
            pl.BlockSpec(memory_space=pltpu.MemorySpace.VMEM),   # i     (N, 1)
            pl.BlockSpec(memory_space=pltpu.MemorySpace.VMEM),   # d     (N, 1)
            pl.BlockSpec(memory_space=pltpu.MemorySpace.VMEM),   # y     (N, 1)
        ],
        out_specs=pl.BlockSpec(memory_space=pltpu.SMEM),
    )(param2, eps.astype(jnp.float32), i_col, d_col, y_col)
    return out[0, 0]


def model_forward_ref(param, eps, i, d, y):
    """Pure-JAX reference mirroring the PyTorch forward (same eps, same layout)."""
    p = param.astype(jnp.float32)
    mus = p[0::2]                                   # (4,)
    lvs = p[1::2]                                   # (4,)
    sds = jnp.exp(0.5 * lvs)
    smp = eps * sds[:, None] + mus[:, None]         # (4, S)
    alpha, beta_0, beta_i, beta_d = smp[0], smp[1], smp[2], smp[3]

    k = jax.nn.sigmoid(alpha) * K_SCALE             # (S,)
    lbd = jax.nn.sigmoid(-(beta_0[None, :]
                           + beta_i[None, :] * i[:, None]
                           + beta_d[None, :] * d[:, None])) * LBD_SCALE   # (N, S)
    yy = y[:, None]
    kk = k[None, :]
    lp = (jnp.log(lbd) - jnp.log(kk) + (lbd - 1.0) * jnp.log(yy / kk)
          - (yy / kk) ** lbd)                                              # (N, S)
    lls_mean = jnp.mean(jnp.sum(lp, axis=0))        # sum over data, mean over samples

    def normal_logprob(mu, sd, x):
        return -0.5 * ((x - mu) / sd) ** 2 - jnp.log(sd) - HALF_LOG_2PI

    pen = (normal_logprob(mus[0], sds[0], alpha)
           + normal_logprob(mus[1], sds[1], beta_0)
           + normal_logprob(mus[2], sds[2], beta_i)
           + normal_logprob(mus[3], sds[3], beta_d))                       # (S,)
    return -lls_mean + jnp.mean(pen)


if __name__ == "__main__":
    key = jax.random.PRNGKey(0)
    k_eps, k_i, k_d, k_y, k_p = jax.random.split(key, 5)

    n_sample = 128   # variational samples -> lane axis (128 lanes)
    N = 8            # data points        -> sublane axis

    eps = jax.random.normal(k_eps, (4, n_sample), dtype=jnp.float32)
    i = jax.random.uniform(k_i, (N,), dtype=jnp.float32)
    d = jax.random.uniform(k_d, (N,), dtype=jnp.float32)
    y = jax.random.uniform(k_y, (N,), dtype=jnp.float32, minval=0.1, maxval=2.0)

    test_params = (
        ("zero-init", jnp.zeros((8,), dtype=jnp.float32)),                 # torch init
        ("random", 0.3 * jax.random.normal(k_p, (8,), dtype=jnp.float32)),  # exercise sd/mu paths
    )
    for name, param in test_params:
        loss = jax.block_until_ready(model_forward(param, eps, i, d, y))
        ref = jax.block_until_ready(model_forward_ref(param, eps, i, d, y))
        assert jnp.isfinite(loss), f"kernel produced non-finite loss ({name})"
        # kernel uses an algebraically refactored log-sigmoid chain, so allow ~1e-3
        assert jnp.allclose(loss, ref, rtol=1e-3, atol=1e-3), (name, loss, ref)
    print("KERNEL_OK")
</pallas_src>

<mosaic_0001>
module attributes {stable_mosaic.version = 11 : i64} {
  func.func @weibull_vi_kernel(%arg0: memref<4x2xf32, #tpu.memory_space<vmem>>, %arg1: memref<4x128xf32, #tpu.memory_space<vmem>>, %arg2: memref<8x1xf32, #tpu.memory_space<vmem>>, %arg3: memref<8x1xf32, #tpu.memory_space<vmem>>, %arg4: memref<8x1xf32, #tpu.memory_space<vmem>>, %arg5: memref<1x1xf32, #tpu.memory_space<smem>>) attributes {dimension_semantics = [], scalar_prefetch = 0 : i64, scratch_operands = 0 : i64, tpu.core_type = #tpu.core_type<tc>} {
    %c0 = arith.constant 0 : index
    %c0_0 = arith.constant 0 : index
    %0 = vector.load %arg0[%c0, %c0_0] : memref<4x2xf32, #tpu.memory_space<vmem>>, vector<4x2xf32>
    %1 = vector.extract_strided_slice %0 {offsets = [0, 0], sizes = [4, 1], strides = [1, 1]} : vector<4x2xf32> to vector<4x1xf32>
    %2 = vector.extract_strided_slice %0 {offsets = [0, 1], sizes = [4, 1], strides = [1, 1]} : vector<4x2xf32> to vector<4x1xf32>
    %cst = arith.constant 5.000000e-01 : f32
    %3 = vector.broadcast %cst : f32 to vector<4x1xf32>
    %4 = arith.mulf %3, %2 : vector<4x1xf32>
    %5 = math.exp %4 : vector<4x1xf32>
    %c0_1 = arith.constant 0 : index
    %c0_2 = arith.constant 0 : index
    %6 = vector.load %arg1[%c0_1, %c0_2] : memref<4x128xf32, #tpu.memory_space<vmem>>, vector<4x128xf32>
    %7 = vector.broadcast %5 : vector<4x1xf32> to vector<4x128xf32>
    %8 = arith.mulf %6, %7 : vector<4x128xf32>
    %9 = vector.broadcast %1 : vector<4x1xf32> to vector<4x128xf32>
    %10 = arith.addf %8, %9 : vector<4x128xf32>
    %11 = vector.extract_strided_slice %10 {offsets = [0, 0], sizes = [1, 128], strides = [1, 1]} : vector<4x128xf32> to vector<1x128xf32>
    %12 = vector.extract_strided_slice %10 {offsets = [1, 0], sizes = [1, 128], strides = [1, 1]} : vector<4x128xf32> to vector<1x128xf32>
    %13 = vector.extract_strided_slice %10 {offsets = [2, 0], sizes = [1, 128], strides = [1, 1]} : vector<4x128xf32> to vector<1x128xf32>
    %14 = vector.extract_strided_slice %10 {offsets = [3, 0], sizes = [1, 128], strides = [1, 1]} : vector<4x128xf32> to vector<1x128xf32>
    %c0_3 = arith.constant 0 : index
    %c0_4 = arith.constant 0 : index
    %15 = vector.load %arg2[%c0_3, %c0_4] : memref<8x1xf32, #tpu.memory_space<vmem>>, vector<8x1xf32>
    %c0_5 = arith.constant 0 : index
    %c0_6 = arith.constant 0 : index
    %16 = vector.load %arg3[%c0_5, %c0_6] : memref<8x1xf32, #tpu.memory_space<vmem>>, vector<8x1xf32>
    %c0_7 = arith.constant 0 : index
    %c0_8 = arith.constant 0 : index
    %17 = vector.load %arg4[%c0_7, %c0_8] : memref<8x1xf32, #tpu.memory_space<vmem>>, vector<8x1xf32>
    %cst_9 = arith.constant 0.000000e+00 : f32
    %18 = vector.broadcast %cst_9 : f32 to vector<1x128xf32>
    %19 = arith.subf %18, %11 : vector<1x128xf32>
    %20 = math.exp %19 : vector<1x128xf32>
    %cst_10 = arith.constant 1.000000e+00 : f32
    %21 = vector.broadcast %cst_10 : f32 to vector<1x128xf32>
    %22 = arith.addf %21, %20 : vector<1x128xf32>
    %23 = math.log %22 : vector<1x128xf32>
    %cst_11 = arith.constant 0.693147182 : f32
    %24 = vector.broadcast %cst_11 : f32 to vector<1x128xf32>
    %25 = arith.subf %24, %23 : vector<1x128xf32>
    %26 = vector.broadcast %13 : vector<1x128xf32> to vector<8x128xf32>
    %27 = vector.broadcast %15 : vector<8x1xf32> to vector<8x128xf32>
    %28 = arith.mulf %26, %27 : vector<8x128xf32>
    %29 = vector.broadcast %12 : vector<1x128xf32> to vector<8x128xf32>
    %30 = arith.addf %29, %28 : vector<8x128xf32>
    %31 = vector.broadcast %14 : vector<1x128xf32> to vector<8x128xf32>
    %32 = vector.broadcast %16 : vector<8x1xf32> to vector<8x128xf32>
    %33 = arith.mulf %31, %32 : vector<8x128xf32>
    %34 = arith.addf %30, %33 : vector<8x128xf32>
    %cst_12 = arith.constant 0.000000e+00 : f32
    %35 = vector.broadcast %cst_12 : f32 to vector<8x128xf32>
    %36 = arith.subf %35, %34 : vector<8x128xf32>
    %cst_13 = arith.constant 0.000000e+00 : f32
    %37 = vector.broadcast %cst_13 : f32 to vector<8x128xf32>
    %38 = arith.subf %37, %36 : vector<8x128xf32>
    %39 = math.exp %38 : vector<8x128xf32>
    %cst_14 = arith.constant 1.000000e+00 : f32
    %40 = vector.broadcast %cst_14 : f32 to vector<8x128xf32>
    %41 = arith.addf %40, %39 : vector<8x128xf32>
    %42 = tpu.reciprocal %41 : vector<8x128xf32> -> vector<8x128xf32>
    %cst_15 = arith.constant 2.000000e+00 : f32
    %43 = vector.broadcast %cst_15 : f32 to vector<8x128xf32>
    %44 = arith.mulf %43, %42 : vector<8x128xf32>
    %45 = math.log %41 : vector<8x128xf32>
    %cst_16 = arith.constant 0.693147182 : f32
    %46 = vector.broadcast %cst_16 : f32 to vector<8x128xf32>
    %47 = arith.subf %46, %45 : vector<8x128xf32>
    %48 = math.log %17 : vector<8x1xf32>
    %49 = vector.broadcast %48 : vector<8x1xf32> to vector<8x128xf32>
    %50 = vector.broadcast %25 : vector<1x128xf32> to vector<8x128xf32>
    %51 = arith.subf %49, %50 : vector<8x128xf32>
    %52 = vector.broadcast %25 : vector<1x128xf32> to vector<8x128xf32>
    %53 = arith.subf %47, %52 : vector<8x128xf32>
    %cst_17 = arith.constant 1.000000e+00 : f32
    %54 = vector.broadcast %cst_17 : f32 to vector<8x128xf32>
    %55 = arith.subf %44, %54 : vector<8x128xf32>
    %56 = arith.mulf %55, %51 : vector<8x128xf32>
    %57 = arith.addf %53, %56 : vector<8x128xf32>
    %58 = arith.mulf %44, %51 : vector<8x128xf32>
    %59 = math.exp %58 : vector<8x128xf32>
    %60 = arith.subf %57, %59 : vector<8x128xf32>
    %61 = vector.shape_cast %60 : vector<8x128xf32> to vector<1x8x128xf32>
    %cst_18 = arith.constant dense<0.000000e+00> : vector<1xf32>
    %62 = vector.multi_reduction <add>, %61, %cst_18 [1, 2] : vector<1x8x128xf32> to vector<1xf32>
    %63 = vector.shape_cast %62 : vector<1xf32> to vector<1x1x1xf32>
    %64 = vector.extract %63[0, 0, 0] : f32 from vector<1x1x1xf32>
    %cst_19 = arith.constant 7.812500e-03 : f32
    %65 = arith.mulf %64, %cst_19 : f32
    %66 = vector.shape_cast %2 : vector<4x1xf32> to vector<1x4x1xf32>
    %cst_20 = arith.constant dense<0.000000e+00> : vector<1xf32>
    %67 = vector.multi_reduction <add>, %66, %cst_20 [1, 2] : vector<1x4x1xf32> to vector<1xf32>
    %68 = vector.shape_cast %67 : vector<1xf32> to vector<1x1x1xf32>
    %69 = vector.extract %68[0, 0, 0] : f32 from vector<1x1x1xf32>
    %cst_21 = arith.constant 5.000000e-01 : f32
    %70 = arith.mulf %cst_21, %69 : f32
    %71 = arith.mulf %6, %6 : vector<4x128xf32>
    %72 = vector.shape_cast %71 : vector<4x128xf32> to vector<1x4x128xf32>
    %cst_22 = arith.constant dense<0.000000e+00> : vector<1xf32>
    %73 = vector.multi_reduction <add>, %72, %cst_22 [1, 2] : vector<1x4x128xf32> to vector<1xf32>
    %74 = vector.shape_cast %73 : vector<1xf32> to vector<1x1x1xf32>
    %75 = vector.extract %74[0, 0, 0] : f32 from vector<1x1x1xf32>
    %cst_23 = arith.constant -5.000000e-01 : f32
    %76 = arith.mulf %cst_23, %75 : f32
    %cst_24 = arith.constant 7.812500e-03 : f32
    %77 = arith.mulf %76, %cst_24 : f32
    %78 = arith.subf %77, %70 : f32
    %cst_25 = arith.constant 3.67575407 : f32
    %79 = arith.subf %78, %cst_25 : f32
    %cst_26 = arith.constant 0.000000e+00 : f32
    %80 = arith.subf %cst_26, %65 : f32
    %81 = arith.addf %80, %79 : f32
    %c0_27 = arith.constant 0 : index
    %c0_28 = arith.constant 0 : index
    %82 = memref.load %arg5[%c0_27, %c0_28] : memref<1x1xf32, #tpu.memory_space<smem>>
    memref.store %81, %arg5[%c0_27, %c0_28] : memref<1x1xf32, #tpu.memory_space<smem>>
    return
  }
}

</mosaic_0001>

<llo_original>
// kernel: tpu_custom_call.1
$region0: #{tpu_custom_call.1}
  #allocation0 [shape = 'u32[]', space=smem, size = 0x4, offset = 0x4, fixed_abs, tag = 'smem constant byte address 0x4 - core index']
  #allocation1 [shape = 'u32[72,128]{1,0:T(1,128)}', space=vmem, size = 0x9000, scoped, tag = 'internal scratch']
  %s0 = inlined_call_operand.vmem [shape: f32[4,2], index: 0, kind: input, shape index: {}]
  %s1 = inlined_call_operand.vmem [shape: f32[4,128], index: 1, kind: input, shape index: {}]
  %s2 = inlined_call_operand.vmem [shape: f32[8,1], index: 2, kind: input, shape index: {}]
  %s3 = inlined_call_operand.vmem [shape: f32[8,1], index: 3, kind: input, shape index: {}]
  %s4 = inlined_call_operand.vmem [shape: f32[8,1], index: 4, kind: input, shape index: {}]
  %s5 = inlined_call_operand.hbm [shape: f32[1,1], index: 5, kind: output, shape index: {}]
  %s6 = sld [smem:[#allocation0]]
  $region30: #{tpu_custom_call.1} parent=0
    _
  %s8 = ssub.s32 1, %s6
  %s9 = scalar_select 0, %s8, %s6
  $region1: #{tpu_custom_call.1} parent=0
    #allocation2 [shape = 'u8[512]{0}', space=smem, size = 0x200, scoped, tag = 'output window, operand 0, single buffered']
    #allocation3 [shape = 's32[1]{0}', space=sflag, size = 0x4, scoped, tag = 'scoped memory for tpu_custom_call.1']
    %10 = vsyncpa [#allocation3], 0
    // Predicated region
    $region2: #{tpu_custom_call.1} parent=1 // pred_check
      _
    $region3: #{tpu_custom_call.1} parent=1 // pred_check_branch
      %12 = sbr.rel (0) target = $region5
    $region4: #{tpu_custom_call.1} parent=1 // pred_region
      _
    $region5: #{tpu_custom_call.1} parent=1 // pred_fallthru
      _
    // Predicated region
    $region6: #{tpu_custom_call.1} parent=1 // pred_check
      _
    $region7: #{tpu_custom_call.1} parent=1 // pred_check_branch
      %14 = sbr.rel (0) target = $region9
    $region8: #{tpu_custom_call.1} parent=1 // pred_region
      _
    $region9: #{tpu_custom_call.1} parent=1 // pred_fallthru
      _
    // Predicated region
    $region10: #{tpu_custom_call.1} parent=1 // pred_check
      _
    $region11: #{tpu_custom_call.1} parent=1 // pred_check_branch
      %16 = sbr.rel (0) target = $region13
    $region12: #{tpu_custom_call.1} parent=1 // pred_region
      _
    $region13: #{tpu_custom_call.1} parent=1 // pred_fallthru
      _
    // Predicated region
    $region14: #{tpu_custom_call.1} parent=1 // pred_check
      _
    $region15: #{tpu_custom_call.1} parent=1 // pred_check_branch
      %18 = sbr.rel (0) target = $region17
    $region16: #{tpu_custom_call.1} parent=1 // pred_region
      _
    $region17: #{tpu_custom_call.1} parent=1 // pred_fallthru
      _
    // Predicated region
    $region18: #{tpu_custom_call.1} parent=1 // pred_check
      _
    $region19: #{tpu_custom_call.1} parent=1 // pred_check_branch
      %20 = sbr.rel (0) target = $region21
    $region20: #{tpu_custom_call.1} parent=1 // pred_region
      _
    $region21: #{tpu_custom_call.1} parent=1 // pred_fallthru
      _
    %v21 = vld [vmem:[%s0] sm:$0xf]
    %v22 = vmul.f32 %v21, 0.5
    %v23 = vmul.f32 %v22, 1.442695
    %v24 = vpow.pop %v23
    %v25 = vld [vmem:[%s1] sm:$0xf]
    %27 = vset.pattern.permute.xlu0 1
    %28 = vperm.xlu0 %27, %v24
    %v29 = vpop.permute.xlu0 %28
    %v31 = vmul.f32 %v25, %v29
    %33 = vset.pattern.permute.xlu0 0
    %34 = vperm.xlu0 %33, %v21
    %v35 = vpop.permute.xlu0 %34
    %v37 = vadd.f32 %v31, %v35
    %v38 = vld [vmem:[%s2] sm:$0xff]
    %v39 = vld [vmem:[%s3] sm:$0xff]
    %v40 = vld [vmem:[%s4] sm:$0xff]
    %v41 = vsub.f32 0.0, %v37
    %v42 = vmul.f32 %v41, 1.442695
    %v43 = vpow.pop %v42
    %v44 = vadd.f32 %v43, 1.0
    %v45 = vlog2.pop %v44
    %v46 = vmul.f32 %v45, 0.6931472
    %v47 = vsub.f32 0.6931472, %v46
    %v48 = vperm.slane %v37, 2
    %50 = vset.pattern.permute.xlu0 0
    %51 = vperm.xlu0 %50, %v38
    %v52 = vpop.permute.xlu0 %51
    %v54 = vmul.f32 %v48, %v52
    %v55 = vperm.slane %v37, 1
    %v56 = vadd.f32 %v55, %v54
    %v57 = vperm.slane %v37, 3
    %59 = vset.pattern.permute.xlu0 0
    %60 = vperm.xlu0 %59, %v39
    %v61 = vpop.permute.xlu0 %60
    %v63 = vmul.f32 %v57, %v61
    %v64 = vadd.f32 %v56, %v63
    %v65 = vsub.f32 0.0, %v64
    %v66 = vsub.f32 0.0, %v65
    %v67 = vmul.f32 %v66, 1.442695
    %v68 = vpow.pop %v67
    %v69 = vadd.f32 %v68, 1.0
    %v70 = vrcp.pop %v69
    %v71 = vmul.f32 %v69, %v70
    %v72 = vsub.f32 1.0, %v71
    %v73 = vmul.f32 %v70, %v72
    %v74 = vadd.f32 %v70, %v73
    %vm75 = vweird.f32 %v69
    %vm76 = vweird.f32 %v70
    %vm77 = vmor %vm75, %vm76
    %v78 = vsel %vm77, %v70, %v74
    %v79 = vand.u32 2147483647, %v69
    %vm80 = vcmp.eq.f32.partialorder %v79, 8.507059e+37
    %v81 = vand.u32 %v69, 2147483648
    %v82 = vor.u32 1.1754944e-38, %v81
    %v83 = vsel %vm80, %v82, %v78
    %v84 = vmul.f32 %v83, 2.0
    %v85 = vlog2.pop %v69
    %v86 = vmul.f32 %v85, 0.6931472
    %v87 = vsub.f32 0.6931472, %v86
    %v88 = vlog2.pop %v40
    %v89 = vmul.f32 %v88, 0.6931472
    %91 = vset.pattern.permute.xlu0 0
    %92 = vperm.xlu0 %91, %v89
    %v93 = vpop.permute.xlu0 %92
    %v95 = vperm.slane %v47, 0
    %v96 = vsub.f32 %v93, %v95
    %v97 = vsub.f32 %v87, %v95
    %v98 = vsub.f32 %v84, 1.0
    %v99 = vmul.f32 %v98, %v96
    %v100 = vadd.f32 %v97, %v99
    %v101 = vmul.f32 %v84, %v96
    %v102 = vmul.f32 %v101, 1.442695
    %v103 = vpow.pop %v102
    %v104 = vsub.f32 %v100, %v103
    %105 = vadd.xlane.f32.xlu0 %v104
    %v106 = vpop.xlane.xlu0 %105
    %v107 = vrot.slane %v106, 4
    %v108 = vadd.f32 %v106, %v107
    %v109 = vrot.slane %v108, 2
    %v110 = vadd.f32 %v108, %v109
    %v111 = vrot.slane %v110, 1
    %v112 = vadd.f32 %v110, %v111
    %s113 = vtos %v112
    %s114 = smul.f32 %s113, 0.0078125
    %115 = vrot.lane.b32.xlu0 %v21, 127
    %v116 = vpop.permute.xlu0 %115
    %vm118 = vcmask 3072
    %v119 = vsel %vm118, %v116, 0.0
    %120 = vadd.xlane.f32.xlu0 %v119
    %v121 = vpop.xlane.xlu0 %120
    %v122 = vrot.slane %v121, 4
    %v123 = vadd.f32 %v121, %v122
    %v124 = vrot.slane %v123, 2
    %v125 = vadd.f32 %v123, %v124
    %v126 = vrot.slane %v125, 1
    %v127 = vadd.f32 %v125, %v126
    %s128 = vtos %v127
    %s129 = smul.f32 %s128, 0.5
    %v130 = vmul.f32 %v25, %v25
    %vm131 = vcmask 1043456
    %v132 = vsel %vm131, %v130, 0.0
    %133 = vadd.xlane.f32.xlu0 %v132
    %v134 = vpop.xlane.xlu0 %133
    %v135 = vrot.slane %v134, 4
    %v136 = vadd.f32 %v134, %v135
    %v137 = vrot.slane %v136, 2
    %v138 = vadd.f32 %v136, %v137
    %v139 = vrot.slane %v138, 1
    %v140 = vadd.f32 %v138, %v139
    %s141 = vtos %v140
    %s142 = smul.f32 %s141, -0.5
    %s143 = smul.f32 %s142, 0.0078125
    %s144 = ssub.f32 %s143, %s129
    %s145 = ssub.f32 %s144, 3.675754
    %s146 = ssub.f32 0.0, %s114
    %s147 = sadd.f32 %s146, %s145
    %s148 = scalar_lea.smem [#allocation2], 0
    %149 = sst [smem:[%s148]] %s147
    // Predicated region
    $region22: #{tpu_custom_call.1} parent=1 // pred_check
      _
    $region23: #{tpu_custom_call.1} parent=1 // pred_check_branch
      %151 = sbr.rel (0) target = $region25
    $region24: #{tpu_custom_call.1} parent=1 // pred_region
      %153 = vsyncadd [#allocation3], 0
      %s155 = sshll.u32 %s5, 4
      %s156 = int_to_ptr.hbm [resolvable:$true] %s155
      %158 = dma.smem_to_hbm [#allocation2], 16, %s156, [#allocation3]
    $region25: #{tpu_custom_call.1} parent=1 // pred_fallthru
      _
    // Predicated region
    $region26: #{tpu_custom_call.1} parent=1 // pred_check
      _
    $region27: #{tpu_custom_call.1} parent=1 // pred_check_branch
      %160 = sbr.rel (0) target = $region29
    $region28: #{tpu_custom_call.1} parent=1 // pred_region
      %162 = dma.done [#allocation3], 16
    $region29: #{tpu_custom_call.1} parent=1 // pred_fallthru
      _
    %163 = sfence
    %164 = vsyncpa [#allocation3], 1

</llo_original>
